<compile_context>
chip_gen: v6e
topology: v6e:2x2x1
jax: 0.10.0
libtpu: 0.0.40
codegen_flags: <defaults>
</compile_context>

<pallas_src>
import jax
import jax.numpy as jnp
from jax.experimental import pallas as pl
from jax.experimental.pallas import tpu as pltpu


# ----------------------------------------------------------------------------
# Default path: zero-cost identity. This is the correct "kernel" for NoOpCell.
# ----------------------------------------------------------------------------
def noop_cell_forward(x, h):
    """NoOpCell.forward: pure pass-through. No kernel, no data movement."""
    return (x, h)


# ----------------------------------------------------------------------------
# Optional kernel-boundary path: fresh output buffers via direct HBM->HBM DMA.
# Used only when a pallas_call boundary / distinct output buffers are required.
# ----------------------------------------------------------------------------
def _noop_dma_kernel(x_hbm, h_hbm, x_out_hbm, h_out_hbm, sem):
    # Direct HBM -> HBM copies; no VMEM staging, no vector loads/stores.
    cx = pltpu.make_async_copy(x_hbm, x_out_hbm, sem.at[0])
    ch = pltpu.make_async_copy(h_hbm, h_out_hbm, sem.at[1])
    cx.start()
    ch.start()
    cx.wait()
    ch.wait()


def noop_cell_forward_pallas(x, h):
    """NoOpCell.forward through a Pallas call (distinct output buffers).

    Inputs/outputs stay in HBM (memory_space=pl.ANY); the kernel issues two
    HBM->HBM DMAs. Works for any shapes/dtypes, including the (batch, 1)
    hidden produced by zero_state.
    """
    return pl.pallas_call(
        _noop_dma_kernel,
        out_shape=(
            jax.ShapeDtypeStruct(x.shape, x.dtype),
            jax.ShapeDtypeStruct(h.shape, h.dtype),
        ),
        in_specs=(
            pl.BlockSpec(memory_space=pl.ANY),
            pl.BlockSpec(memory_space=pl.ANY),
        ),
        out_specs=(
            pl.BlockSpec(memory_space=pl.ANY),
            pl.BlockSpec(memory_space=pl.ANY),
        ),
        scratch_shapes=(pltpu.SemaphoreType.DMA((2,)),),
    )(x, h)


def noop_cell_zero_state(batch_size, dtype=jnp.float32):
    """Matches NoOpCell.zero_state: zeros of shape (batch_size, 1)."""
    return jnp.zeros((batch_size, 1), dtype=dtype)


if __name__ == "__main__":
    # NoOpCell(in_features=32, out_features=32); no learnable parameters.
    batch, features = 2, 32
    key = jax.random.PRNGKey(0)
    kx, kh = jax.random.split(key)
    x = jax.random.normal(kx, (batch, features), dtype=jnp.float32)
    h = jax.random.normal(kh, (batch, features), dtype=jnp.float32)

    # 1) Default path: zero-cost identity (recommended).
    out_x, out_h = noop_cell_forward(x, h)
    jax.block_until_ready((out_x, out_h))
    assert out_x is x and out_h is h

    # 2) Kernel-boundary path: direct HBM->HBM DMA copy, bit-exact.
    px, ph = noop_cell_forward_pallas(x, h)
    jax.block_until_ready((px, ph))
    assert px.shape == x.shape and ph.shape == h.shape
    assert jnp.array_equal(px, x) and jnp.array_equal(ph, h)

    # 3) zero_state hidden of shape (batch, 1) passes through unchanged
    #    (no feature-shape assert, matching PyTorch semantics).
    zs = noop_cell_zero_state(batch)
    assert zs.shape == (batch, 1) and jnp.all(zs == 0)
    qx, qh = noop_cell_forward_pallas(x, zs)
    jax.block_until_ready((qx, qh))
    assert qh.shape == (batch, 1)
    assert jnp.array_equal(qx, x) and jnp.array_equal(qh, zs)

    print("KERNEL_OK")
</pallas_src>

<mosaic_0001>
module attributes {stable_mosaic.version = 11 : i64} {
  func.func @_noop_dma_kernel(%arg0: memref<2x32xf32, #tpu.memory_space<any>>, %arg1: memref<2x32xf32, #tpu.memory_space<any>>, %arg2: memref<2x32xf32, #tpu.memory_space<any>>, %arg3: memref<2x32xf32, #tpu.memory_space<any>>, %arg4: memref<2x!tpu.dma_semaphore, #tpu.memory_space<semaphore_mem>>) attributes {dimension_semantics = [], scalar_prefetch = 0 : i64, scratch_operands = 1 : i64, tpu.core_type = #tpu.core_type<tc>} {
    %c0_i32 = arith.constant 0 : i32
    %0 = tpu.memref_slice %arg4[%c0_i32] : memref<2x!tpu.dma_semaphore, #tpu.memory_space<semaphore_mem>> -> memref<1x!tpu.dma_semaphore, #tpu.memory_space<semaphore_mem>>
    %1 = tpu.memref_squeeze %0 : memref<1x!tpu.dma_semaphore, #tpu.memory_space<semaphore_mem>> -> memref<!tpu.dma_semaphore, #tpu.memory_space<semaphore_mem>>
    tpu.enqueue_dma source(%arg0 : memref<2x32xf32, #tpu.memory_space<any>>) target(%arg2 : memref<2x32xf32, #tpu.memory_space<any>>) target_semaphore(%1 : memref<!tpu.dma_semaphore, #tpu.memory_space<semaphore_mem>>)
    %c1_i32 = arith.constant 1 : i32
    %2 = tpu.memref_slice %arg4[%c1_i32] : memref<2x!tpu.dma_semaphore, #tpu.memory_space<semaphore_mem>> -> memref<1x!tpu.dma_semaphore, #tpu.memory_space<semaphore_mem>>
    %3 = tpu.memref_squeeze %2 : memref<1x!tpu.dma_semaphore, #tpu.memory_space<semaphore_mem>> -> memref<!tpu.dma_semaphore, #tpu.memory_space<semaphore_mem>>
    tpu.enqueue_dma source(%arg1 : memref<2x32xf32, #tpu.memory_space<any>>) target(%arg3 : memref<2x32xf32, #tpu.memory_space<any>>) target_semaphore(%3 : memref<!tpu.dma_semaphore, #tpu.memory_space<semaphore_mem>>)
    %c0_i32_0 = arith.constant 0 : i32
    %4 = tpu.memref_slice %arg4[%c0_i32_0] : memref<2x!tpu.dma_semaphore, #tpu.memory_space<semaphore_mem>> -> memref<1x!tpu.dma_semaphore, #tpu.memory_space<semaphore_mem>>
    %5 = tpu.memref_squeeze %4 : memref<1x!tpu.dma_semaphore, #tpu.memory_space<semaphore_mem>> -> memref<!tpu.dma_semaphore, #tpu.memory_space<semaphore_mem>>
    tpu.wait_dma2 semaphore(%5 : memref<!tpu.dma_semaphore, #tpu.memory_space<semaphore_mem>>) src(%arg0 : memref<2x32xf32, #tpu.memory_space<any>>) dst(%arg2 : memref<2x32xf32, #tpu.memory_space<any>>)
    %c1_i32_1 = arith.constant 1 : i32
    %6 = tpu.memref_slice %arg4[%c1_i32_1] : memref<2x!tpu.dma_semaphore, #tpu.memory_space<semaphore_mem>> -> memref<1x!tpu.dma_semaphore, #tpu.memory_space<semaphore_mem>>
    %7 = tpu.memref_squeeze %6 : memref<1x!tpu.dma_semaphore, #tpu.memory_space<semaphore_mem>> -> memref<!tpu.dma_semaphore, #tpu.memory_space<semaphore_mem>>
    tpu.wait_dma2 semaphore(%7 : memref<!tpu.dma_semaphore, #tpu.memory_space<semaphore_mem>>) src(%arg1 : memref<2x32xf32, #tpu.memory_space<any>>) dst(%arg3 : memref<2x32xf32, #tpu.memory_space<any>>)
    return
  }
}

</mosaic_0001>

<llo_original>
// kernel: tpu_custom_call.1
$region0: #{tpu_custom_call.1}
  #allocation0 [shape = 'u32[]', space=smem, size = 0x4, offset = 0x4, fixed_abs, tag = 'smem constant byte address 0x4 - core index']
  #allocation1 [shape = 'u32[144,128]{1,0:T(1,128)}', space=vmem, size = 0x12000, scoped, tag = 'internal scratch']
  #allocation2 [shape = 's32[2]{0}', space=sflag, size = 0x8, scoped, tag = 'scratch operand']
  #allocation3 [shape = 's32[]', space=sflag, size = 0x4, offset = 0, fixed_abs, tag = 'sflag constant byte address 0x0 - dummy sync flag']
  #allocation4 [shape = 'u32[0]{0}', space=smem, size = 0, offset = 0, fixed_abs, tag = 'smem constant byte address 0x0 - null']
  #allocation5 [shape = 's32[]', space=sflag, size = 0x4, offset = 0, fixed_abs, tag = 'sflag constant byte address 0x0 - dummy sync flag']
  #allocation6 [shape = 'u32[0]{0}', space=smem, size = 0, offset = 0, fixed_abs, tag = 'smem constant byte address 0x0 - null']
  %s0 = inlined_call_operand.hbm [shape: f32[2,32], index: 0, kind: input, shape index: {}]
  %s1 = inlined_call_operand.hbm [shape: f32[2,32], index: 1, kind: input, shape index: {}]
  %s2 = inlined_call_operand.hbm [shape: f32[2,32], index: 2, kind: output, shape index: {0}]
  %s3 = inlined_call_operand.hbm [shape: f32[2,32], index: 3, kind: output, shape index: {1}]
  %4 = xla_tuple %s2, %s3
  %s5 = sld [smem:[#allocation0]]
  $region2: #{tpu_custom_call.1} parent=0
    _
  %s7 = ssub.s32 1, %s5
  %s8 = scalar_select 0, %s7, %s5
  %s10 = sshll.u32 1, 14
  %s11 = sxor.u32 4294967295, %s10
  %15 = dma.general %s0, 32, %s2, [#allocation2], 131072, [#allocation4], 0, 0
  %s16 = scalar_lea.sflag [#allocation2], 1
  %s18 = sshll.u32 1, 14
  %s19 = sxor.u32 4294967295, %s18
  %23 = dma.general %s1, 32, %s3, %s16, 131072, [#allocation6], 0, 0
  %s24 = smul.u32 2, 1
  %s25 = sshll.u32 %s24, 4
  %26 = dma.done [#allocation2], %s25
  %s27 = sshll.u32 %s24, 4
  %28 = dma.done %s16, %s27
  %29 = vsyncmov [#allocation2]
  %s30 = vpop.sfrf %29
  %p31 = scmp.eq.s32.totalorder %s30, 0
  %p32 = pneg %p31
  %34 = shalt.err (%p32)
  %s35 = scalar_lea.sflag [#allocation2], 1
  %36 = vsyncmov %s35
  %s37 = vpop.sfrf %36
  %p38 = scmp.eq.s32.totalorder %s37, 0
  %p39 = pneg %p38
  %41 = shalt.err (%p39)

</llo_original>
